<compile_context>
chip_gen: v5e
topology: v5e:2x2
jax: 0.10.0
libtpu: 0.0.40
codegen_flags: <defaults>
</compile_context>

<pallas_src>
import functools
import math
from typing import NamedTuple

import jax
import jax.numpy as jnp
from jax.experimental import pallas as pl
from jax.experimental.pallas import tpu as pltpu

_INV_SQRT2 = 1.0 / math.sqrt(2.0)
_MiB = 1024 * 1024


def _round_up(x, m):
    return ((x + m - 1) // m) * m


def _tpu_defaults():
    """(physical VMEM per core in bytes, default tm) by TPU generation."""
    try:
        kind = jax.devices()[0].device_kind.lower()
    except Exception:  # pragma: no cover - defensive
        kind = ""
    if "v7" in kind or "7x" in kind:
        return 64 * _MiB, 768          # 2 TC/chip, 64 MiB VMEM per TC
    if "v6" in kind:
        return 128 * _MiB, 1024
    if "v5e" in kind or "v5 lite" in kind or "v5lite" in kind:
        return 128 * _MiB, 512         # bf16 MXU, mem/compute ratio OK at 512
    if "v5" in kind:                   # v5p and friends
        return 128 * _MiB, 1024
    return 64 * _MiB, 512              # unknown: be conservative


class EsmIntermediateParams(NamedTuple):
    weight_t: jax.Array        # (H, I_pad), bf16 (default) or f32, padded
    bias: jax.Array            # (1, I_pad), f32, padded
    intermediate_size: int     # original I (for slicing the pad off)
    tn: int                    # lane-dense tile width used for the padding


def prepare_esm_intermediate_params(weight, bias, *, tn=512, use_bf16_matmul=True):
    """One-time prep: transpose (I,H)->(H,I), pad I to a tile multiple, cast.

    weight: (I, H) in PyTorch nn.Linear layout;  bias: (I,)
    """
    weight = jnp.asarray(weight)
    bias = jnp.asarray(bias)
    I, H = weight.shape

    tn_eff = _round_up(min(tn, _round_up(I, 128)), 128)   # lane-dense tn
    I_pad = _round_up(I, tn_eff)

    w_t = weight.T                                          # (H, I)
    b = bias
    if I_pad != I:
        w_t = jnp.pad(w_t, ((0, 0), (0, I_pad - I)))
        b = jnp.pad(b, (0, I_pad - I))

    if use_bf16_matmul:
        w_t = w_t.astype(jnp.bfloat16)
    b = b.reshape(1, I_pad).astype(jnp.float32)
    return EsmIntermediateParams(w_t, b, int(I), int(tn_eff))


def _esm_intermediate_kernel(x_ref, w_ref, b_ref, o_ref, *, compute_dtype):
    # x_ref: (tm, H)  w_ref: (H, tn)  b_ref: (1, tn)  o_ref: (tm, tn)
    x = x_ref[...].astype(compute_dtype)          # in-kernel cast (hides under MXU)
    acc = jnp.dot(x, w_ref[...], preferred_element_type=jnp.float32)
    acc = acc + b_ref[...]                        # bias already f32
    # Exact (erf-based) GELU in f32, matching the original ESM implementation.
    y = acc * (0.5 * (1.0 + jax.lax.erf(acc * _INV_SQRT2)))
    o_ref[...] = y.astype(o_ref.dtype)


def esm_intermediate(hidden_states, params: EsmIntermediateParams, *,
                     tm=None, out_dtype=None, w_buffers=2):
    """y = gelu_exact(x @ W.T + b)

    hidden_states: (B, S, H)
    params:        from prepare_esm_intermediate_params (W already padded/cast)
    out_dtype:     None -> hidden_states.dtype; pass jnp.bfloat16 to halve the
                   (I = 4H wide) writeback when the consumer runs in bf16.
    """
    B, S, H = hidden_states.shape
    Hw, I_pad = params.weight_t.shape
    assert Hw == H, "params.weight_t must be (hidden, intermediate_pad)"
    I = params.intermediate_size
    tn_eff = params.tn
    out_dtype = hidden_states.dtype if out_dtype is None else out_dtype

    compute_dtype = params.weight_t.dtype
    x_itemsize = jnp.dtype(hidden_states.dtype).itemsize
    w_itemsize = jnp.dtype(compute_dtype).itemsize
    o_itemsize = jnp.dtype(out_dtype).itemsize

    vmem_phys, tm_default = _tpu_defaults()
    if tm is None:
        tm = tm_default

    # --- tile sizing: sublane-aligned tm; x is the resident operand ----------
    sub = 16 if (compute_dtype == jnp.bfloat16 or out_dtype == jnp.bfloat16) else 8
    M = B * S
    M_sub = _round_up(M, sub)

    if M_sub <= 1024:
        # Small M: keep the whole activation resident so W streams exactly once.
        tm_eff = M_sub
    else:
        tm_eff = _round_up(min(tm, M_sub), sub)

    # VMEM-fit: double-buffered x/W/bias tiles + double-buffered out tile.
    def tile_budget(tm_):
        return (2 * (tm_ * H * x_itemsize + H * tn_eff * w_itemsize + tn_eff * 4)
                + 2 * tm_ * tn_eff * o_itemsize)

    tile_cap = int(0.8 * vmem_phys)            # leave room for compiler scratch
    while tile_budget(tm_eff) > tile_cap and tm_eff > sub:
        tm_eff = max(sub, _round_up(tm_eff // 2, sub))

    M_pad = _round_up(M, tm_eff)
    grid = (M_pad // tm_eff, I_pad // tn_eff)
    n_i, n_j = grid
    # NOTE(v7x): with n_i == 1 (small M), n_j should be >= 2 for both
    # TensorCores to get work; real ESM sizes (I >= 5120, tn = 512) satisfy it.

    x2d = hidden_states.reshape(M, H)
    if M_pad != M:
        x2d = jnp.pad(x2d, ((0, M_pad - M), (0, 0)))

    # --- cost estimate: x resident (read once), W/bias streamed n_i times ----
    x_bytes = M_pad * H * x_itemsize
    w_bytes = H * I_pad * w_itemsize
    b_bytes = I_pad * 4
    o_bytes = M_pad * I_pad * o_itemsize
    cost = pl.CostEstimate(
        flops=2 * M_pad * I_pad * H,
        transcendentals=M_pad * I_pad,
        bytes_accessed=x_bytes + (w_bytes + b_bytes) * n_i + o_bytes,
    )

    # --- VMEM limit: tile budget + headroom, generation-aware hard cap -------
    hard_cap = 56 * _MiB if vmem_phys <= 64 * _MiB else 100 * _MiB
    vmem_limit = int(min(tile_budget(tm_eff) + 8 * _MiB, hard_cap))

    w_spec_kwargs = {}
    if w_buffers > 2:
        # Deeper buffering on the streamed operand if DMA is still exposed.
        w_spec_kwargs["pipeline_mode"] = pl.Buffered(w_buffers)

    kernel = functools.partial(_esm_intermediate_kernel, compute_dtype=compute_dtype)

    out = pl.pallas_call(
        kernel,
        out_shape=jax.ShapeDtypeStruct((M_pad, I_pad), out_dtype),
        grid_spec=pltpu.PrefetchScalarGridSpec(
            num_scalar_prefetch=0,
            grid=grid,
            in_specs=[
                pl.BlockSpec((tm_eff, H), lambda i, j: (i, 0)),      # x (resident over j)
                pl.BlockSpec((H, tn_eff), lambda i, j: (0, j),       # W (streamed)
                             **w_spec_kwargs),
                pl.BlockSpec((1, tn_eff), lambda i, j: (0, j)),      # bias
            ],
            out_specs=pl.BlockSpec((tm_eff, tn_eff), lambda i, j: (i, j)),
        ),
        compiler_params=pltpu.CompilerParams(
            dimension_semantics=("parallel", "parallel"),
            vmem_limit_bytes=vmem_limit,
        ),
        cost_estimate=cost,
    )(x2d, params.weight_t, params.bias)

    if M_pad != M or I_pad != I:
        out = out[:M, :I]
    return out.reshape(B, S, I)


def reference(hidden_states, weight, bias):
    x = jnp.einsum("bsh,ih->bsi", hidden_states, weight) + bias
    return x * 0.5 * (1.0 + jax.lax.erf(x / math.sqrt(2.0)))


if __name__ == "__main__":
    # Small config: hidden_size=32, intermediate_size=64, batch=2, seq=8
    B, S, H, I = 2, 8, 32, 64

    key = jax.random.PRNGKey(0)
    kx, kw, kb = jax.random.split(key, 3)

    hidden_states = jax.random.normal(kx, (B, S, H), dtype=jnp.float32)
    # Deterministic "Linear" parameters (torch layout: weight (I, H), bias (I,))
    weight = jax.random.normal(kw, (I, H), dtype=jnp.float32) * (1.0 / math.sqrt(H))
    bias = jax.random.normal(kb, (I,), dtype=jnp.float32) * 0.01

    ref = reference(hidden_states, weight, bias)

    # f32 MXU path: tight-tolerance check vs reference.
    params_f32 = prepare_esm_intermediate_params(weight, bias, use_bf16_matmul=False)
    out_f32 = esm_intermediate(hidden_states, params_f32)
    out_f32 = jax.block_until_ready(out_f32)
    assert out_f32.shape == (B, S, I)
    assert jnp.allclose(out_f32, ref, atol=1e-5, rtol=1e-5), "f32 path mismatch"

    # Default fast path: bf16 weights + in-kernel x cast, f32 accumulation.
    params_bf16 = prepare_esm_intermediate_params(weight, bias, use_bf16_matmul=True)
    out_bf16 = esm_intermediate(hidden_states, params_bf16)
    out_bf16 = jax.block_until_ready(out_bf16)
    assert out_bf16.shape == (B, S, I)
    assert jnp.allclose(out_bf16, ref, atol=5e-2, rtol=5e-2), "bf16 path mismatch"

    # Opt-in bf16 output (halves the wide-I writeback for bf16 consumers).
    out_bf16_out = esm_intermediate(hidden_states, params_bf16, out_dtype=jnp.bfloat16)
    out_bf16_out = jax.block_until_ready(out_bf16_out)
    assert out_bf16_out.dtype == jnp.bfloat16 and out_bf16_out.shape == (B, S, I)
    assert jnp.allclose(out_bf16_out.astype(jnp.float32), ref, atol=1e-1, rtol=1e-1)

    print("KERNEL_OK")
</pallas_src>

<mosaic_0001>
module attributes {stable_mosaic.version = 11 : i64} {
  func.func @_esm_intermediate_kernel(%arg0: i32, %arg1: i32, %arg2: memref<16x32xf32, #tpu.memory_space<vmem>>, %arg3: memref<32x128xf32, #tpu.memory_space<vmem>>, %arg4: memref<1x128xf32, #tpu.memory_space<vmem>>, %arg5: memref<16x128xf32, #tpu.memory_space<vmem>>) attributes {dimension_semantics = [#tpu.dimension_semantics<parallel>, #tpu.dimension_semantics<parallel>], iteration_bounds = array<i64: 1, 1>, scalar_prefetch = 0 : i64, scratch_operands = 0 : i64, tpu.core_type = #tpu.core_type<tc>, window_params = [{transform_indices = @transform_0, window_bounds = array<i64: 16, 32>}, {transform_indices = @transform_1, window_bounds = array<i64: 32, 128>}, {transform_indices = @transform_2, window_bounds = array<i64: 1, 128>}, {transform_indices = @transform_3, window_bounds = array<i64: 16, 128>}]} {
    %c0 = arith.constant 0 : index
    %c0_0 = arith.constant 0 : index
    %0 = vector.load %arg2[%c0, %c0_0] : memref<16x32xf32, #tpu.memory_space<vmem>>, vector<16x32xf32>
    %c0_1 = arith.constant 0 : index
    %c0_2 = arith.constant 0 : index
    %1 = vector.load %arg3[%c0_1, %c0_2] : memref<32x128xf32, #tpu.memory_space<vmem>>, vector<32x128xf32>
    %cst = arith.constant dense<0.000000e+00> : vector<16x128xf32>
    %2 = tpu.matmul %0, %1, %cst {dimension_numbers = #tpu.dot_dimension_numbers<[1], [0], [0], [1], [0, 0, 1, 1], [], []>} : vector<16x32xf32>, vector<32x128xf32>, vector<16x128xf32> -> vector<16x128xf32>
    %c0_3 = arith.constant 0 : index
    %c0_4 = arith.constant 0 : index
    %3 = vector.load %arg4[%c0_3, %c0_4] : memref<1x128xf32, #tpu.memory_space<vmem>>, vector<1x128xf32>
    %4 = vector.broadcast %3 : vector<1x128xf32> to vector<16x128xf32>
    %5 = arith.addf %2, %4 : vector<16x128xf32>
    %cst_5 = arith.constant 0.707106769 : f32
    %6 = vector.broadcast %cst_5 : f32 to vector<16x128xf32>
    %7 = arith.mulf %5, %6 : vector<16x128xf32>
    %8 = math.erf %7 : vector<16x128xf32>
    %cst_6 = arith.constant 1.000000e+00 : f32
    %9 = vector.broadcast %cst_6 : f32 to vector<16x128xf32>
    %10 = arith.addf %9, %8 : vector<16x128xf32>
    %cst_7 = arith.constant 5.000000e-01 : f32
    %11 = vector.broadcast %cst_7 : f32 to vector<16x128xf32>
    %12 = arith.mulf %11, %10 : vector<16x128xf32>
    %13 = arith.mulf %5, %12 : vector<16x128xf32>
    %c0_8 = arith.constant 0 : index
    %c0_9 = arith.constant 0 : index
    %14 = vector.load %arg5[%c0_8, %c0_9] : memref<16x128xf32, #tpu.memory_space<vmem>>, vector<16x128xf32>
    tpu.vector_store %arg5[%c0_8, %c0_9], %13 {strides = array<i32>} : memref<16x128xf32, #tpu.memory_space<vmem>>, vector<16x128xf32>,
    return
  }
  func.func @transform_0(%arg0: i32, %arg1: i32) -> (i32, i32) {
    %c0_i32 = arith.constant 0 : i32
    %c0_i32_0 = arith.constant 0 : i32
    return %arg0, %c0_i32 : i32, i32
  }
  func.func @transform_1(%arg0: i32, %arg1: i32) -> (i32, i32) {
    %c0_i32 = arith.constant 0 : i32
    %c0_i32_0 = arith.constant 0 : i32
    return %c0_i32, %arg1 : i32, i32
  }
  func.func @transform_2(%arg0: i32, %arg1: i32) -> (i32, i32) {
    %c0_i32 = arith.constant 0 : i32
    %c0_i32_0 = arith.constant 0 : i32
    return %c0_i32, %arg1 : i32, i32
  }
  func.func @transform_3(%arg0: i32, %arg1: i32) -> (i32, i32) {
    %c0_i32 = arith.constant 0 : i32
    return %arg0, %arg1 : i32, i32
  }
}

</mosaic_0001>

<llo_original>
// kernel: tpu_custom_call.1
$region0: #{tpu_custom_call.1}
  #allocation0 [shape = 'u32[]', space=smem, size = 0x4, offset = 0x4, fixed_abs, tag = 'smem constant byte address 0x4 - core index']
  #allocation1 [shape = 'u32[72,128]{1,0:T(1,128)}', space=vmem, size = 0x9000, scoped, tag = 'internal scratch']
  %s0 = inlined_call_operand.hbm [shape: f32[16,32], index: 0, kind: input, shape index: {}]
  %s1 = inlined_call_operand.hbm [shape: f32[32,128], index: 1, kind: input, shape index: {}]
  %s2 = inlined_call_operand.vmem [shape: f32[1,128], index: 2, kind: input, shape index: {}]
  %s3 = inlined_call_operand.hbm [shape: f32[16,128], index: 3, kind: output, shape index: {}]
  %s4 = sld [smem:[#allocation0]]
  $region30: #{tpu_custom_call.1} parent=0
    _
  %s6 = ssub.s32 1, %s4
  %s7 = scalar_select 0, %s6, %s4
  $region1: #{tpu_custom_call.1} parent=0
    #allocation2 [shape = 'u8[8192]{0}', space=vmem, size = 0x2000, scoped, tag = 'input window, operand 0, single buffered']
    #allocation3 [shape = 's32[1]{0}', space=sflag, size = 0x4, scoped, tag = 'scoped memory for tpu_custom_call.1']
    #allocation4 [shape = 's32[1]{0}', space=sflag, size = 0x4, scoped, tag = 'scoped memory for tpu_custom_call.1']
    #allocation5 [shape = 'u8[16384]{0}', space=vmem, size = 0x4000, scoped, tag = 'input window, operand 1, single buffered']
    #allocation6 [shape = 's32[1]{0}', space=sflag, size = 0x4, scoped, tag = 'scoped memory for tpu_custom_call.1']
    #allocation7 [shape = 'u8[8192]{0}', space=vmem, size = 0x2000, scoped, tag = 'output window, operand 0, single buffered']
    %8 = vsyncpa [#allocation3], 0
    %9 = vsyncpa [#allocation6], 0
    %10 = vsyncpa [#allocation4], 0
    // Predicated region
    $region2: #{tpu_custom_call.1} parent=1 // pred_check
      _
    $region3: #{tpu_custom_call.1} parent=1 // pred_check_branch
      %12 = sbr.rel (0) target = $region5
    $region4: #{tpu_custom_call.1} parent=1 // pred_region
      %14 = vsyncadd [#allocation3], 0
      %s15 = sshll.u32 %s0, 4
      %s16 = int_to_ptr.hbm [resolvable:$true] %s15
      %s17 = sshll.u32 [#allocation2], 4
      %s18 = int_to_ptr.vmem [resolvable:$true] %s17
      %23 = dma.hbm_to_vmem [thread:$0]  %s16, 256, %s18, [#allocation3], 128, 128, 8
    $region5: #{tpu_custom_call.1} parent=1 // pred_fallthru
      _
    // Predicated region
    $region6: #{tpu_custom_call.1} parent=1 // pred_check
      _
    $region7: #{tpu_custom_call.1} parent=1 // pred_check_branch
      %25 = sbr.rel (0) target = $region9
    $region8: #{tpu_custom_call.1} parent=1 // pred_region
      %27 = vsyncadd [#allocation6], 0
      %s28 = sshll.u32 %s1, 4
      %s29 = int_to_ptr.hbm [resolvable:$true] %s28
      %s30 = sshll.u32 [#allocation5], 4
      %s31 = int_to_ptr.vmem [resolvable:$true] %s30
      %36 = dma.hbm_to_vmem [thread:$0]  %s29, 512, %s31, [#allocation6], 128, 128, 8
    $region9: #{tpu_custom_call.1} parent=1 // pred_fallthru
      _
    // Predicated region
    $region10: #{tpu_custom_call.1} parent=1 // pred_check
      _
    $region11: #{tpu_custom_call.1} parent=1 // pred_check_branch
      %38 = sbr.rel (0) target = $region13
    $region12: #{tpu_custom_call.1} parent=1 // pred_region
      _
    $region13: #{tpu_custom_call.1} parent=1 // pred_fallthru
      _
    // Predicated region
    $region14: #{tpu_custom_call.1} parent=1 // pred_check
      _
    $region15: #{tpu_custom_call.1} parent=1 // pred_check_branch
      %40 = sbr.rel (0) target = $region17
    $region16: #{tpu_custom_call.1} parent=1 // pred_region
      %42 = dma.done [#allocation3], 256
    $region17: #{tpu_custom_call.1} parent=1 // pred_fallthru
      _
    // Predicated region
    $region18: #{tpu_custom_call.1} parent=1 // pred_check
      _
    $region19: #{tpu_custom_call.1} parent=1 // pred_check_branch
      %44 = sbr.rel (0) target = $region21
    $region20: #{tpu_custom_call.1} parent=1 // pred_region
      %46 = dma.done [#allocation6], 512
    $region21: #{tpu_custom_call.1} parent=1 // pred_fallthru
      _
    %v47 = vld [vmem:[#allocation2] sm:$0xff]
    %v48 = vld [vmem:[#allocation2 + $0x8] sm:$0xff]
    %v49 = vld [vmem:[#allocation5] sm:$0xff]
    %v50 = vld [vmem:[#allocation5 + $0x8] sm:$0xff]
    %v51 = vld [vmem:[#allocation5 + $0x10] sm:$0xff]
    %v52 = vld [vmem:[#allocation5 + $0x18] sm:$0xff]
    %v53 = vld [vmem:[%s2] sm:$0x1]
    %v55 = vperm.slane %v53, 0
    %vm57 = vcmask 261120
    %v59 = vsel %vm57, %v47, 0
    %v62 = vsel %vm57, %v48, 0
    %64 = vmatpush.msra.mxu0 0.0
    %65 = vmatpush.msra.mxu0 0.0
    %66 = vmatpush.msra.mxu0 0.0
    %67 = vmatpush.msra.mxu0 0.0
    %68 = vmatpush.msra.mxu0 0.0
    %69 = vmatpush.msra.mxu0 0.0
    %70 = vmatpush.msra.mxu0 0.0
    %71 = vmatpush.msra.mxu0 0.0
    %72 = vmatpush.msra.mxu0 0.0
    %73 = vmatpush.msra.mxu0 0.0
    %74 = vmatpush.msra.mxu0 0.0
    %75 = vmatpush.msra.mxu0 0.0
    %76 = vmatpush.msra.mxu0 %v52
    %77 = vmatpush.msra.mxu0 %v51
    %78 = vmatpush.msra.mxu0 %v50
    %79 = vmatpush.msra.mxu0 %v49
    %80 = vmatmul.f32.gmra.mxu0 %v59
    %v81 = vpop.f32.mrf.mxu0
    %v82 = vadd.f32 %v55, %v81
    %83 = vmatmul.f32.gmra.mxu0 %v62
    %v84 = vpop.f32.mrf.mxu0
    %v85 = vadd.f32 %v55, %v84
    %86 = vdwg.mxu0
    %v87 = vmul.f32 %v82, 0.70710677
    %v88 = vmul.f32 %v85, 0.70710677
    %v89 = vmul.f32 %v87, %v87
    %v90 = vmin.f32 16.0, %v89
    %v91 = vmul.f32 %v90, 2.1237322e-06
    %v92 = vadd.f32 %v91, 0.00028619796
    %v93 = vmul.f32 %v90, %v92
    %v94 = vadd.f32 %v93, 0.0036580483
    %v95 = vmul.f32 %v90, %v94
    %v96 = vadd.f32 %v95, 0.05243302
    %v97 = vmul.f32 %v90, %v96
    %v98 = vadd.f32 %v97, 0.18741608
    %v99 = vmul.f32 %v90, %v98
    %v100 = vadd.f32 %v99, 1.1283791
    %v101 = vmul.f32 %v87, %v100
    %v102 = vmul.f32 %v90, 3.8918573e-05
    %v103 = vadd.f32 %v102, 0.001143296
    %v104 = vmul.f32 %v90, %v103
    %v105 = vadd.f32 %v104, 0.014752088
    %v106 = vmul.f32 %v90, %v105
    %v107 = vadd.f32 %v106, 0.112945676
    %v108 = vmul.f32 %v90, %v107
    %v109 = vadd.f32 %v108, 0.4994258
    %v110 = vmul.f32 %v90, %v109
    %v111 = vadd.f32 %v110, 1.0
    %v112 = vrcp.pop %v111
    %v113 = vmul.f32 %v111, %v112
    %v114 = vsub.f32 1.0, %v113
    %v115 = vmul.f32 %v112, %v114
    %v116 = vadd.f32 %v112, %v115
    %vm117 = vweird.f32 %v111
    %vm118 = vweird.f32 %v112
    %vm119 = vmor %vm117, %vm118
    %v120 = vsel %vm119, %v112, %v116
    %v121 = vand.u32 2147483647, %v111
    %vm122 = vcmp.eq.f32.partialorder %v121, 8.507059e+37
    %v123 = vand.u32 %v111, 2147483648
    %v124 = vor.u32 1.1754944e-38, %v123
    %v125 = vsel %vm122, %v124, %v120
    %v126 = vmul.f32 %v101, %v125
    %v127 = vmin.f32 %v126, 1.0
    %v128 = vmax.f32 %v127, -1.0
    %v129 = vmul.f32 %v88, %v88
    %v130 = vmin.f32 16.0, %v129
    %v131 = vmul.f32 %v130, 2.1237322e-06
    %v132 = vadd.f32 %v131, 0.00028619796
    %v133 = vmul.f32 %v130, %v132
    %v134 = vadd.f32 %v133, 0.0036580483
    %v135 = vmul.f32 %v130, %v134
    %v136 = vadd.f32 %v135, 0.05243302
    %v137 = vmul.f32 %v130, %v136
    %v138 = vadd.f32 %v137, 0.18741608
    %v139 = vmul.f32 %v130, %v138
    %v140 = vadd.f32 %v139, 1.1283791
    %v141 = vmul.f32 %v88, %v140
    %v142 = vmul.f32 %v130, 3.8918573e-05
    %v143 = vadd.f32 %v142, 0.001143296
    %v144 = vmul.f32 %v130, %v143
    %v145 = vadd.f32 %v144, 0.014752088
    %v146 = vmul.f32 %v130, %v145
    %v147 = vadd.f32 %v146, 0.112945676
    %v148 = vmul.f32 %v130, %v147
    %v149 = vadd.f32 %v148, 0.4994258
    %v150 = vmul.f32 %v130, %v149
    %v151 = vadd.f32 %v150, 1.0
    %v152 = vrcp.pop %v151
    %v153 = vmul.f32 %v151, %v152
    %v154 = vsub.f32 1.0, %v153
    %v155 = vmul.f32 %v152, %v154
    %v156 = vadd.f32 %v152, %v155
    %vm157 = vweird.f32 %v151
    %vm158 = vweird.f32 %v152
    %vm159 = vmor %vm157, %vm158
    %v160 = vsel %vm159, %v152, %v156
    %v161 = vand.u32 2147483647, %v151
    %vm162 = vcmp.eq.f32.partialorder %v161, 8.507059e+37
    %v163 = vand.u32 %v151, 2147483648
    %v164 = vor.u32 1.1754944e-38, %v163
    %v165 = vsel %vm162, %v164, %v160
    %v166 = vmul.f32 %v141, %v165
    %v167 = vmin.f32 %v166, 1.0
    %v168 = vmax.f32 %v167, -1.0
    %v169 = vadd.f32 %v128, 1.0
    %v170 = vadd.f32 %v168, 1.0
    %v171 = vmul.f32 %v169, 0.5
    %v172 = vmul.f32 %v170, 0.5
    %v173 = vmul.f32 %v82, %v171
    %v174 = vmul.f32 %v85, %v172
    %175 = vst [vmem:[#allocation7] sm:$0xff] %v173
    %176 = vst [vmem:[#allocation7 + $0x8] sm:$0xff] %v174
    // Predicated region
    $region22: #{tpu_custom_call.1} parent=1 // pred_check
      _
    $region23: #{tpu_custom_call.1} parent=1 // pred_check_branch
      %178 = sbr.rel (0) target = $region25
    $region24: #{tpu_custom_call.1} parent=1 // pred_region
      %180 = vsyncadd [#allocation4], 0
      %s181 = sshll.u32 [#allocation7], 4
      %s182 = int_to_ptr.vmem [resolvable:$true] %s181
      %s183 = sshll.u32 %s3, 4
      %s184 = int_to_ptr.hbm [resolvable:$true] %s183
      %189 = dma.vmem_to_hbm [thread:$0]  %s182, 256, %s184, [#allocation4], 128, 128, 8
    $region25: #{tpu_custom_call.1} parent=1 // pred_fallthru
      _
    // Predicated region
    $region26: #{tpu_custom_call.1} parent=1 // pred_check
      _
    $region27: #{tpu_custom_call.1} parent=1 // pred_check_branch
      %191 = sbr.rel (0) target = $region29
    $region28: #{tpu_custom_call.1} parent=1 // pred_region
      %193 = dma.done [#allocation4], 256
    $region29: #{tpu_custom_call.1} parent=1 // pred_fallthru
      _
    %194 = vsyncpa [#allocation3], 1
    %195 = vsyncpa [#allocation6], 1
    %196 = vsyncpa [#allocation4], 1

</llo_original>
